<compile_context>
chip_gen: v5e
topology: v5e:2x2
jax: 0.10.0
libtpu: 0.0.40
codegen_flags: <defaults>
</compile_context>

<pallas_src>
import math

import jax
import jax.numpy as jnp
from jax.experimental import pallas as pl
from jax.experimental.pallas import tpu as pltpu


def _se_kernel(x_ref, w1t_ref, w2t_ref, o_ref):
    # x_ref  : (B_blk, C, HW)  channels on sublanes, spatial on lanes (lane-dense)
    # w1t_ref: (C, Hpad)       W1^T, hidden dim zero-padded (f32)
    # w2t_ref: (Hpad, C)       W2^T, hidden dim zero-padded (f32)
    # o_ref  : (B_blk, C, HW)
    hw = x_ref.shape[-1]

    # Global average pool over the spatial (lane) axis.  Accumulate in f32, but the
    # cast fuses into the reduction -- no full f32 copy of the block is kept live.
    pooled = jnp.sum(x_ref[...].astype(jnp.float32), axis=-1) * jnp.float32(1.0 / hw)  # (B_blk, C)

    # Squeeze -> ReLU -> Excite, batched over the whole batch block (M = B_blk).
    h = jnp.dot(pooled, w1t_ref[...], preferred_element_type=jnp.float32)  # (B_blk, Hpad)
    h = jnp.maximum(h, 0.0)
    y = jnp.dot(h, w2t_ref[...], preferred_element_type=jnp.float32)       # (B_blk, C)

    # Sigmoid (exp on the EUP; exact divide kept so the kernel matches the reference
    # to 1e-5 -- the divide is O(B_blk*C) and nowhere near the bottleneck).
    gate = 1.0 / (1.0 + jnp.exp(-y))                                       # (B_blk, C)

    # Channel gate in the native dtype, broadcast along the lane (spatial) axis.
    o_ref[...] = x_ref[...] * gate.astype(o_ref.dtype)[:, :, None]


def _choose_batch_block(b, per_elem_bytes, target_bytes=4 << 20, min_split_bytes=1 << 19):
    """Pick how many batch elements to process per grid step.

    Target a few-MB tile (so in+out double-buffered blocks stay well under VMEM on
    every generation, incl. v7x's 64 MiB), keep >=4 grid steps when the batch is
    large enough (v7x has 2 TensorCores), and snap to a divisor of b so every block
    is full (no ragged tail).
    """
    b_blk = max(1, min(b, target_bytes // max(per_elem_bytes, 1)))
    if b >= 4 and b_blk * per_elem_bytes >= min_split_bytes:
        b_blk = max(1, min(b_blk, b // 4))
    while b % b_blk:
        b_blk -= 1
    return b_blk


def se_layer_forward(x_nchw, w1, w2):
    """SELayer forward.

    x_nchw: (B, C, H, W)
    w1    : (C//r, C)  first Linear weight (PyTorch layout, no bias)
    w2    : (C, C//r)  second Linear weight (PyTorch layout, no bias)
    returns (B, C, H, W)
    """
    b, c, h, w = x_nchw.shape
    hid = w1.shape[0]
    assert w1.shape == (hid, c) and w2.shape == (c, hid)

    hw = h * w
    # Free contiguous view of NCHW (no transpose / pad / extra HBM round trip).
    # TODO(synk): if H*W is not a multiple of 128 (e.g. 7x7 maps), a channels-on-lanes
    # (B, HW, C) layout would avoid masked vst.msk stores; test shape (HW=256) is lane-dense.
    x2 = x_nchw.reshape(b, c, hw)

    # Tiny weights: transpose once, zero-pad the hidden dim to a sublane multiple.
    # Exact: padded hidden units produce ReLU(0)=0 and multiply zero rows of W2^T.
    hid_pad = max(8, ((hid + 7) // 8) * 8)
    w1t = jnp.pad(jnp.transpose(w1).astype(jnp.float32), ((0, 0), (0, hid_pad - hid)))  # (C, Hpad)
    w2t = jnp.pad(jnp.transpose(w2).astype(jnp.float32), ((0, hid_pad - hid), (0, 0)))  # (Hpad, C)

    itemsize = jnp.dtype(x_nchw.dtype).itemsize
    per_elem = c * hw * itemsize
    b_blk = _choose_batch_block(b, per_elem)
    n_steps = b // b_blk

    block_bytes = b_blk * per_elem
    weight_bytes = (w1t.size + w2t.size) * 4
    # in + out double-buffered blocks + weights + slack; explicit so the 16/32 MiB
    # default scoped limits (and v7x's 64 MiB physical VMEM) never bite.
    vmem_limit = int(min(64 << 20,
                         max(16 << 20, 4 * block_bytes + 4 * weight_bytes + (2 << 20))))

    cost = pl.CostEstimate(
        flops=2 * b * c * hw + 4 * b * c * hid_pad,
        transcendentals=b * c,
        bytes_accessed=2 * b * c * hw * itemsize + 2 * weight_bytes,
    )

    out = pl.pallas_call(
        _se_kernel,
        out_shape=jax.ShapeDtypeStruct((b, c, hw), x_nchw.dtype),
        grid_spec=pltpu.PrefetchScalarGridSpec(
            num_scalar_prefetch=0,
            grid=(n_steps,),
            in_specs=[
                pl.BlockSpec((b_blk, c, hw), lambda i: (i, 0, 0)),
                pl.BlockSpec((c, hid_pad), lambda i: (0, 0)),
                pl.BlockSpec((hid_pad, c), lambda i: (0, 0)),
            ],
            out_specs=pl.BlockSpec((b_blk, c, hw), lambda i: (i, 0, 0)),
        ),
        compiler_params=pltpu.CompilerParams(
            dimension_semantics=("parallel",),
            vmem_limit_bytes=vmem_limit,
        ),
        cost_estimate=cost,
    )(x2, w1t, w2t)

    return out.reshape(b, c, h, w)


def _reference(x_nchw, w1, w2):
    xf = x_nchw.astype(jnp.float32)
    pooled = jnp.mean(xf, axis=(2, 3))                              # (B, C)
    h = jnp.maximum(pooled @ w1.astype(jnp.float32).T, 0.0)         # (B, C//r)
    y = 1.0 / (1.0 + jnp.exp(-(h @ w2.astype(jnp.float32).T)))      # (B, C)
    return (xf * y[:, :, None, None]).astype(x_nchw.dtype)


if __name__ == "__main__":
    # SELayer(channel=32, reduction=16) -> hidden = 2
    channel, reduction = 32, 16
    hidden = channel // reduction
    batch, H, W = 2, 16, 16

    key = jax.random.PRNGKey(0)
    kx, k1, k2 = jax.random.split(key, 3)

    x = jax.random.normal(kx, (batch, channel, H, W), dtype=jnp.float32)

    # Deterministic Kaiming-uniform-like init (as nn.Linear defaults, no bias).
    bound1 = 1.0 / math.sqrt(channel)
    w1 = jax.random.uniform(k1, (hidden, channel),
                            minval=-bound1, maxval=bound1, dtype=jnp.float32)
    bound2 = 1.0 / math.sqrt(hidden)
    w2 = jax.random.uniform(k2, (channel, hidden),
                            minval=-bound2, maxval=bound2, dtype=jnp.float32)

    out = jax.block_until_ready(se_layer_forward(x, w1, w2))

    ref = _reference(x, w1, w2)
    assert out.shape == (batch, channel, H, W)
    assert jnp.allclose(out, ref, atol=1e-5, rtol=1e-5)

    print("KERNEL_OK")
</pallas_src>

<mosaic_0001>
module attributes {stable_mosaic.version = 11 : i64} {
  func.func @_se_kernel(%arg0: i32, %arg1: memref<2x32x256xf32, #tpu.memory_space<vmem>>, %arg2: memref<32x8xf32, #tpu.memory_space<vmem>>, %arg3: memref<8x32xf32, #tpu.memory_space<vmem>>, %arg4: memref<2x32x256xf32, #tpu.memory_space<vmem>>) attributes {dimension_semantics = [#tpu.dimension_semantics<parallel>], iteration_bounds = array<i64: 1>, scalar_prefetch = 0 : i64, scratch_operands = 0 : i64, tpu.core_type = #tpu.core_type<tc>, window_params = [{transform_indices = @transform_0, window_bounds = array<i64: 2, 32, 256>}, {pipeline_mode = #tpu.pipeline_mode<synchronous>, transform_indices = @transform_1, window_bounds = array<i64: 32, 8>}, {pipeline_mode = #tpu.pipeline_mode<synchronous>, transform_indices = @transform_2, window_bounds = array<i64: 8, 32>}, {transform_indices = @transform_3, window_bounds = array<i64: 2, 32, 256>}]} {
    %c0 = arith.constant 0 : index
    %c0_0 = arith.constant 0 : index
    %c0_1 = arith.constant 0 : index
    %0 = vector.load %arg1[%c0, %c0_0, %c0_1] : memref<2x32x256xf32, #tpu.memory_space<vmem>>, vector<2x32x256xf32>
    %cst = arith.constant dense<0.000000e+00> : vector<2x32xf32>
    %1 = vector.multi_reduction <add>, %0, %cst [2] : vector<2x32x256xf32> to vector<2x32xf32>
    %cst_2 = arith.constant 3.906250e-03 : f32
    %2 = vector.broadcast %cst_2 : f32 to vector<2x32xf32>
    %3 = arith.mulf %1, %2 : vector<2x32xf32>
    %c0_3 = arith.constant 0 : index
    %c0_4 = arith.constant 0 : index
    %4 = vector.load %arg2[%c0_3, %c0_4] : memref<32x8xf32, #tpu.memory_space<vmem>>, vector<32x8xf32>
    %cst_5 = arith.constant dense<0.000000e+00> : vector<2x8xf32>
    %5 = tpu.matmul %3, %4, %cst_5 {dimension_numbers = #tpu.dot_dimension_numbers<[1], [0], [0], [1], [0, 0, 1, 1], [], []>} : vector<2x32xf32>, vector<32x8xf32>, vector<2x8xf32> -> vector<2x8xf32>
    %cst_6 = arith.constant 0.000000e+00 : f32
    %6 = vector.broadcast %cst_6 : f32 to vector<2x8xf32>
    %7 = arith.maximumf %5, %6 : vector<2x8xf32>
    %c0_7 = arith.constant 0 : index
    %c0_8 = arith.constant 0 : index
    %8 = vector.load %arg3[%c0_7, %c0_8] : memref<8x32xf32, #tpu.memory_space<vmem>>, vector<8x32xf32>
    %cst_9 = arith.constant dense<0.000000e+00> : vector<2x32xf32>
    %9 = tpu.matmul %7, %8, %cst_9 {dimension_numbers = #tpu.dot_dimension_numbers<[1], [0], [0], [1], [0, 0, 1, 1], [], []>} : vector<2x8xf32>, vector<8x32xf32>, vector<2x32xf32> -> vector<2x32xf32>
    %cst_10 = arith.constant 0.000000e+00 : f32
    %10 = vector.broadcast %cst_10 : f32 to vector<2x32xf32>
    %11 = arith.subf %10, %9 : vector<2x32xf32>
    %12 = math.exp %11 : vector<2x32xf32>
    %cst_11 = arith.constant 1.000000e+00 : f32
    %13 = vector.broadcast %cst_11 : f32 to vector<2x32xf32>
    %14 = arith.addf %13, %12 : vector<2x32xf32>
    %cst_12 = arith.constant 1.000000e+00 : f32
    %15 = vector.broadcast %cst_12 : f32 to vector<2x32xf32>
    %16 = arith.divf %15, %14 : vector<2x32xf32>
    %c0_13 = arith.constant 0 : index
    %c0_14 = arith.constant 0 : index
    %c0_15 = arith.constant 0 : index
    %17 = vector.load %arg1[%c0_13, %c0_14, %c0_15] : memref<2x32x256xf32, #tpu.memory_space<vmem>>, vector<2x32x256xf32>
    %18 = vector.shape_cast %16 : vector<2x32xf32> to vector<2x32x1xf32>
    %19 = vector.broadcast %18 : vector<2x32x1xf32> to vector<2x32x256xf32>
    %20 = arith.mulf %17, %19 : vector<2x32x256xf32>
    %c0_16 = arith.constant 0 : index
    %c0_17 = arith.constant 0 : index
    %c0_18 = arith.constant 0 : index
    %21 = vector.load %arg4[%c0_16, %c0_17, %c0_18] : memref<2x32x256xf32, #tpu.memory_space<vmem>>, vector<2x32x256xf32>
    tpu.vector_store %arg4[%c0_16, %c0_17, %c0_18], %20 {strides = array<i32>} : memref<2x32x256xf32, #tpu.memory_space<vmem>>, vector<2x32x256xf32>,
    return
  }
  func.func @transform_0(%arg0: i32) -> (i32, i32, i32) {
    %c0_i32 = arith.constant 0 : i32
    %c0_i32_0 = arith.constant 0 : i32
    %c0_i32_1 = arith.constant 0 : i32
    return %arg0, %c0_i32, %c0_i32_0 : i32, i32, i32
  }
  func.func @transform_1(%arg0: i32) -> (i32, i32) {
    %c0_i32 = arith.constant 0 : i32
    %c0_i32_0 = arith.constant 0 : i32
    %c0_i32_1 = arith.constant 0 : i32
    return %c0_i32, %c0_i32_0 : i32, i32
  }
  func.func @transform_2(%arg0: i32) -> (i32, i32) {
    %c0_i32 = arith.constant 0 : i32
    %c0_i32_0 = arith.constant 0 : i32
    %c0_i32_1 = arith.constant 0 : i32
    return %c0_i32, %c0_i32_0 : i32, i32
  }
  func.func @transform_3(%arg0: i32) -> (i32, i32, i32) {
    %c0_i32 = arith.constant 0 : i32
    %c0_i32_0 = arith.constant 0 : i32
    %c0_i32_1 = arith.constant 0 : i32
    return %arg0, %c0_i32, %c0_i32_0 : i32, i32, i32
  }
}

</mosaic_0001>

<llo_original>
// kernel: tpu_custom_call.1
$region0: #{tpu_custom_call.1}
  #allocation0 [shape = 'u32[]', space=smem, size = 0x4, offset = 0x4, fixed_abs, tag = 'smem constant byte address 0x4 - core index']
  #allocation1 [shape = 'u32[72,128]{1,0:T(1,128)}', space=vmem, size = 0x9000, scoped, tag = 'internal scratch']
  %s0 = inlined_call_operand.hbm [shape: f32[2,32,256], index: 0, kind: input, shape index: {}]
  %s1 = inlined_call_operand.vmem [shape: f32[32,8], index: 1, kind: input, shape index: {}]
  %s2 = inlined_call_operand.vmem [shape: f32[8,32], index: 2, kind: input, shape index: {}]
  %s3 = inlined_call_operand.hbm [shape: f32[2,32,256], index: 3, kind: output, shape index: {}]
  %s4 = sld [smem:[#allocation0]]
  $region26: #{tpu_custom_call.1} parent=0
    _
  %s6 = ssub.s32 1, %s4
  %s7 = scalar_select 0, %s6, %s4
  $region1: #{tpu_custom_call.1} parent=0
    #allocation2 [shape = 'u8[65536]{0}', space=vmem, size = 0x10000, scoped, tag = 'input window, operand 0, single buffered']
    #allocation3 [shape = 's32[1]{0}', space=sflag, size = 0x4, scoped, tag = 'scoped memory for tpu_custom_call.1']
    #allocation4 [shape = 's32[1]{0}', space=sflag, size = 0x4, scoped, tag = 'scoped memory for tpu_custom_call.1']
    #allocation5 [shape = 'u8[65536]{0}', space=vmem, size = 0x10000, scoped, tag = 'output window, operand 0, single buffered']
    %8 = vsyncpa [#allocation3], 0
    %9 = vsyncpa [#allocation4], 0
    // Predicated region
    $region2: #{tpu_custom_call.1} parent=1 // pred_check
      _
    $region3: #{tpu_custom_call.1} parent=1 // pred_check_branch
      %11 = sbr.rel (0) target = $region5
    $region4: #{tpu_custom_call.1} parent=1 // pred_region
      %13 = vsyncadd [#allocation3], 0
      %s14 = sshll.u32 %s0, 4
      %s15 = int_to_ptr.hbm [resolvable:$true] %s14
      %s16 = sshll.u32 [#allocation2], 4
      %s17 = int_to_ptr.vmem [resolvable:$true] %s16
      %22 = dma.hbm_to_vmem [thread:$0]  %s15, 2048, %s17, [#allocation3], 256, 256, 16
    $region5: #{tpu_custom_call.1} parent=1 // pred_fallthru
      _
    // Predicated region
    $region6: #{tpu_custom_call.1} parent=1 // pred_check
      _
    $region7: #{tpu_custom_call.1} parent=1 // pred_check_branch
      %24 = sbr.rel (0) target = $region9
    $region8: #{tpu_custom_call.1} parent=1 // pred_region
      _
    $region9: #{tpu_custom_call.1} parent=1 // pred_fallthru
      _
    // Predicated region
    $region10: #{tpu_custom_call.1} parent=1 // pred_check
      _
    $region11: #{tpu_custom_call.1} parent=1 // pred_check_branch
      %26 = sbr.rel (0) target = $region13
    $region12: #{tpu_custom_call.1} parent=1 // pred_region
      _
    $region13: #{tpu_custom_call.1} parent=1 // pred_fallthru
      _
    // Predicated region
    $region14: #{tpu_custom_call.1} parent=1 // pred_check
      _
    $region15: #{tpu_custom_call.1} parent=1 // pred_check_branch
      %28 = sbr.rel (0) target = $region17
    $region16: #{tpu_custom_call.1} parent=1 // pred_region
      %30 = dma.done [#allocation3], 2048
    $region17: #{tpu_custom_call.1} parent=1 // pred_fallthru
      _
    %v31 = vld [vmem:[#allocation2] sm:$0xff]
    %v32 = vld [vmem:[#allocation2 + $0x8] sm:$0xff]
    %v33 = vld [vmem:[#allocation2 + $0x10] sm:$0xff]
    %v34 = vld [vmem:[#allocation2 + $0x18] sm:$0xff]
    %v35 = vld [vmem:[#allocation2 + $0x20] sm:$0xff]
    %v36 = vld [vmem:[#allocation2 + $0x28] sm:$0xff]
    %v37 = vld [vmem:[#allocation2 + $0x30] sm:$0xff]
    %v38 = vld [vmem:[#allocation2 + $0x38] sm:$0xff]
    %v39 = vld [vmem:[#allocation2 + $0x40] sm:$0xff]
    %v40 = vld [vmem:[#allocation2 + $0x48] sm:$0xff]
    %v41 = vld [vmem:[#allocation2 + $0x50] sm:$0xff]
    %v42 = vld [vmem:[#allocation2 + $0x58] sm:$0xff]
    %v43 = vld [vmem:[#allocation2 + $0x60] sm:$0xff]
    %v44 = vld [vmem:[#allocation2 + $0x68] sm:$0xff]
    %v45 = vld [vmem:[#allocation2 + $0x70] sm:$0xff]
    %v46 = vld [vmem:[#allocation2 + $0x78] sm:$0xff]
    %v47 = vadd.f32 %v31, %v32
    %48 = vadd.xlane.f32.xlu0 %v47
    %v49 = vpop.xlane.xlu0 %48
    %v50 = vadd.f32 %v33, %v34
    %51 = vadd.xlane.f32.xlu0 %v50
    %v52 = vpop.xlane.xlu0 %51
    %v53 = vadd.f32 %v35, %v36
    %54 = vadd.xlane.f32.xlu0 %v53
    %v55 = vpop.xlane.xlu0 %54
    %v56 = vadd.f32 %v37, %v38
    %57 = vadd.xlane.f32.xlu0 %v56
    %v58 = vpop.xlane.xlu0 %57
    %v59 = vadd.f32 %v39, %v40
    %60 = vadd.xlane.f32.xlu0 %v59
    %v61 = vpop.xlane.xlu0 %60
    %v62 = vadd.f32 %v41, %v42
    %63 = vadd.xlane.f32.xlu0 %v62
    %v64 = vpop.xlane.xlu0 %63
    %v65 = vadd.f32 %v43, %v44
    %66 = vadd.xlane.f32.xlu0 %v65
    %v67 = vpop.xlane.xlu0 %66
    %v68 = vadd.f32 %v45, %v46
    %69 = vadd.xlane.f32.xlu0 %v68
    %v70 = vpop.xlane.xlu0 %69
    %v71 = vmul.f32 %v49, 0.00390625
    %v72 = vmul.f32 %v52, 0.00390625
    %v73 = vmul.f32 %v55, 0.00390625
    %v74 = vmul.f32 %v58, 0.00390625
    %v75 = vmul.f32 %v61, 0.00390625
    %v76 = vmul.f32 %v64, 0.00390625
    %v77 = vmul.f32 %v67, 0.00390625
    %v78 = vmul.f32 %v70, 0.00390625
    %v79 = vld [vmem:[%s1] sm:$0xff]
    %v80 = vld [vmem:[%s1 + $0x8] sm:$0xff]
    %v81 = vld [vmem:[%s1 + $0x10] sm:$0xff]
    %v82 = vld [vmem:[%s1 + $0x18] sm:$0xff]
    %v91 = vlaneseq
    %v92 = vand.u32 %v91, 127
    %v93 = vperm.slane %v71, %v92
    %v94 = vadd.s32 %v92, 4294967288
    %v95 = vperm.slane %v72, %v94
    %vm96 = vcmask 130112
    %v97 = vsel %vm96, %v95, %v93
    %v98 = vadd.s32 %v92, 4294967280
    %v99 = vperm.slane %v73, %v98
    %vm100 = vcmask 195712
    %v101 = vsel %vm100, %v99, %v97
    %v102 = vadd.s32 %v92, 4294967272
    %v103 = vperm.slane %v74, %v102
    %vm104 = vcmask 261312
    %v105 = vsel %vm104, %v103, %v101
    %v106 = vperm.slane %v75, %v92
    %v107 = vperm.slane %v76, %v94
    %v108 = vsel %vm96, %v107, %v106
    %v109 = vperm.slane %v77, %v98
    %v110 = vsel %vm100, %v109, %v108
    %v111 = vperm.slane %v78, %v102
    %v112 = vsel %vm104, %v111, %v110
    %vm113 = vcmask 1041409
    %v114 = vsel %vm113, %v112, %v105
    %vm115 = vcmask 261120
    %v116 = vsel %vm115, %v114, 0
    %118 = vmatpush.msra.mxu0 0.0
    %119 = vmatpush.msra.mxu0 0.0
    %120 = vmatpush.msra.mxu0 0.0
    %121 = vmatpush.msra.mxu0 0.0
    %122 = vmatpush.msra.mxu0 0.0
    %123 = vmatpush.msra.mxu0 0.0
    %124 = vmatpush.msra.mxu0 0.0
    %125 = vmatpush.msra.mxu0 0.0
    %126 = vmatpush.msra.mxu0 0.0
    %127 = vmatpush.msra.mxu0 0.0
    %128 = vmatpush.msra.mxu0 0.0
    %129 = vmatpush.msra.mxu0 0.0
    %130 = vmatpush.msra.mxu0 %v82
    %131 = vmatpush.msra.mxu0 %v81
    %132 = vmatpush.msra.mxu0 %v80
    %133 = vmatpush.msra.mxu0 %v79
    %134 = vmatmul.f32.gmra.mxu0 %v116
    %v135 = vpop.f32.mrf.mxu0
    %v136 = vadd.f32 0.0, %v135
    %137 = vdwg.mxu0
    %v138 = vmax.f32 %v136, 0.0
    %v139 = vld [vmem:[%s2] sm:$0xff]
    %vm140 = vcmask 64512
    %v142 = vsel %vm140, %v138, 0
    %144 = vmatpush.msra.mxu0 0.0
    %145 = vmatpush.msra.mxu0 0.0
    %146 = vmatpush.msra.mxu0 0.0
    %147 = vmatpush.msra.mxu0 0.0
    %148 = vmatpush.msra.mxu0 0.0
    %149 = vmatpush.msra.mxu0 0.0
    %150 = vmatpush.msra.mxu0 0.0
    %151 = vmatpush.msra.mxu0 0.0
    %152 = vmatpush.msra.mxu0 0.0
    %153 = vmatpush.msra.mxu0 0.0
    %154 = vmatpush.msra.mxu0 0.0
    %155 = vmatpush.msra.mxu0 0.0
    %156 = vmatpush.msra.mxu0 0.0
    %157 = vmatpush.msra.mxu0 0.0
    %158 = vmatpush.msra.mxu0 0.0
    %159 = vmatpush.msra.mxu0 %v139
    %160 = vmatmul.f32.gmra.mxu0 %v142
    %v161 = vpop.f32.mrf.mxu0
    %v162 = vadd.f32 0.0, %v161
    %163 = vdwg.mxu0
    %v164 = vsub.f32 0.0, %v162
    %v165 = vmul.f32 %v164, 1.442695
    %v166 = vpow.pop %v165
    %v167 = vadd.f32 %v166, 1.0
    %v168 = vrcp.pop %v167
    %v169 = vmul.f32 %v167, %v168
    %v170 = vsub.f32 1.0, %v169
    %v171 = vmul.f32 %v168, %v170
    %v172 = vadd.f32 %v168, %v171
    %vm173 = vweird.f32 %v167
    %vm174 = vweird.f32 %v168
    %vm175 = vmor %vm173, %vm174
    %v176 = vsel %vm175, %v168, %v172
    %v177 = vand.u32 2147483647, %v167
    %vm178 = vcmp.eq.f32.partialorder %v177, 8.507059e+37
    %v179 = vand.u32 %v167, 2147483648
    %v180 = vor.u32 1.1754944e-38, %v179
    %v181 = vsel %vm178, %v180, %v176
    %v182 = vmul.f32 1.0, %v181
    %v183 = vperm.slane %v182, 0
    %v184 = vlaneseq
    %v185 = vshrl.u32 %v184, 7
    %187 = vset.pattern.permute.xlu0 %v185
    %188 = vperm.xlu0 %187, %v183
    %v189 = vpop.permute.xlu0 %188
    %v190 = vlaneseq
    %v191 = vshrl.u32 %v190, 7
    %v192 = vadd.s32 %v191, 8
    %193 = vset.pattern.permute.xlu0 %v192
    %194 = vperm.xlu0 %193, %v183
    %v195 = vpop.permute.xlu0 %194
    %v196 = vlaneseq
    %v197 = vshrl.u32 %v196, 7
    %v198 = vadd.s32 %v197, 16
    %199 = vset.pattern.permute.xlu0 %v198
    %200 = vperm.xlu0 %199, %v183
    %v201 = vpop.permute.xlu0 %200
    %v202 = vlaneseq
    %v203 = vshrl.u32 %v202, 7
    %v204 = vadd.s32 %v203, 24
    %205 = vset.pattern.permute.xlu0 %v204
    %206 = vperm.xlu0 %205, %v183
    %v207 = vpop.permute.xlu0 %206
    %v208 = vperm.slane %v182, 1
    %v209 = vlaneseq
    %v210 = vshrl.u32 %v209, 7
    %212 = vset.pattern.permute.xlu0 %v210
    %213 = vperm.xlu0 %212, %v208
    %v214 = vpop.permute.xlu0 %213
    %v215 = vlaneseq
    %v216 = vshrl.u32 %v215, 7
    %v217 = vadd.s32 %v216, 8
    %218 = vset.pattern.permute.xlu0 %v217
    %219 = vperm.xlu0 %218, %v208
    %v220 = vpop.permute.xlu0 %219
    %v221 = vlaneseq
    %v222 = vshrl.u32 %v221, 7
    %v223 = vadd.s32 %v222, 16
    %224 = vset.pattern.permute.xlu0 %v223
    %225 = vperm.xlu0 %224, %v208
    %v226 = vpop.permute.xlu0 %225
    %v227 = vlaneseq
    %v228 = vshrl.u32 %v227, 7
    %v229 = vadd.s32 %v228, 24
    %230 = vset.pattern.permute.xlu0 %v229
    %231 = vperm.xlu0 %230, %v208
    %v232 = vpop.permute.xlu0 %231
    %v233 = vmul.f32 %v31, %v189
    %v234 = vmul.f32 %v32, %v189
    %v235 = vmul.f32 %v33, %v195
    %v236 = vmul.f32 %v34, %v195
    %v237 = vmul.f32 %v35, %v201
    %v238 = vmul.f32 %v36, %v201
    %v239 = vmul.f32 %v37, %v207
    %v240 = vmul.f32 %v38, %v207
    %v241 = vmul.f32 %v39, %v214
    %v242 = vmul.f32 %v40, %v214
    %v243 = vmul.f32 %v41, %v220
    %v244 = vmul.f32 %v42, %v220
    %v245 = vmul.f32 %v43, %v226
    %v246 = vmul.f32 %v44, %v226
    %v247 = vmul.f32 %v45, %v232
    %v248 = vmul.f32 %v46, %v232
    %249 = vst [vmem:[#allocation5] sm:$0xff] %v233
    %250 = vst [vmem:[#allocation5 + $0x8] sm:$0xff] %v234
    %251 = vst [vmem:[#allocation5 + $0x10] sm:$0xff] %v235
    %252 = vst [vmem:[#allocation5 + $0x18] sm:$0xff] %v236
    %253 = vst [vmem:[#allocation5 + $0x20] sm:$0xff] %v237
    %254 = vst [vmem:[#allocation5 + $0x28] sm:$0xff] %v238
    %255 = vst [vmem:[#allocation5 + $0x30] sm:$0xff] %v239
    %256 = vst [vmem:[#allocation5 + $0x38] sm:$0xff] %v240
    %257 = vst [vmem:[#allocation5 + $0x40] sm:$0xff] %v241
    %258 = vst [vmem:[#allocation5 + $0x48] sm:$0xff] %v242
    %259 = vst [vmem:[#allocation5 + $0x50] sm:$0xff] %v243
    %260 = vst [vmem:[#allocation5 + $0x58] sm:$0xff] %v244
    %261 = vst [vmem:[#allocation5 + $0x60] sm:$0xff] %v245
    %262 = vst [vmem:[#allocation5 + $0x68] sm:$0xff] %v246
    %263 = vst [vmem:[#allocation5 + $0x70] sm:$0xff] %v247
    %264 = vst [vmem:[#allocation5 + $0x78] sm:$0xff] %v248
    // Predicated region
    $region18: #{tpu_custom_call.1} parent=1 // pred_check
      _
    $region19: #{tpu_custom_call.1} parent=1 // pred_check_branch
      %266 = sbr.rel (0) target = $region21
    $region20: #{tpu_custom_call.1} parent=1 // pred_region
      %268 = vsyncadd [#allocation4], 0
      %s269 = sshll.u32 [#allocation5], 4
      %s270 = int_to_ptr.vmem [resolvable:$true] %s269
      %s271 = sshll.u32 %s3, 4
      %s272 = int_to_ptr.hbm [resolvable:$true] %s271
      %277 = dma.vmem_to_hbm [thread:$0]  %s270, 2048, %s272, [#allocation4], 256, 256, 16
    $region21: #{tpu_custom_call.1} parent=1 // pred_fallthru
      _
    // Predicated region
    $region22: #{tpu_custom_call.1} parent=1 // pred_check
      _
    $region23: #{tpu_custom_call.1} parent=1 // pred_check_branch
      %279 = sbr.rel (0) target = $region25
    $region24: #{tpu_custom_call.1} parent=1 // pred_region
      %281 = dma.done [#allocation4], 2048
    $region25: #{tpu_custom_call.1} parent=1 // pred_fallthru
      _
    %282 = vsyncpa [#allocation3], 1
    %283 = vsyncpa [#allocation4], 1

</llo_original>
